<compile_context>
chip_gen: v7x
topology: tpu7x:2x2x1
jax: 0.10.0
libtpu: 0.0.40
codegen_flags: <defaults>
</compile_context>

<pallas_src>
import functools

import numpy as np
import jax
import jax.numpy as jnp
from jax import lax
from jax.experimental import pallas as pl
from jax.experimental.pallas import tpu as pltpu

NUM_CLASSES = 7
UP_K = 44                              # upsample kernel size
UP_N = NUM_CLASSES * UP_K * UP_K       # 13552 valid output columns

# torchvision vgg16 `.features` config (3x3 convs, 'M' = 2x2 maxpool)
VGG16_CFG = [(3, 64), (64, 64), 'M',
             (64, 128), (128, 128), 'M',
             (128, 256), (256, 256), (256, 256), 'M',
             (256, 512), (512, 512), (512, 512), 'M',
             (512, 512), (512, 512), (512, 512), 'M']

VMEM_LIMIT = 48 * 1024 * 1024          # safe on v5e/v6e (128 MiB) and v7x (64 MiB)


def _round_up(x, m):
    return (x + m - 1) // m * m


def _pick_tile(d, cap, align=128):
    """Largest tile <= cap (multiple of `align`) dividing round_up(d, align)."""
    dp = _round_up(d, align)
    best = min(align, dp)
    t = align
    while t <= min(cap, dp):
        if dp % t == 0:
            best = t
        t += align
    return best


def _cparams(dims):
    return pltpu.CompilerParams(dimension_semantics=dims,
                                vmem_limit_bytes=VMEM_LIMIT)


# --------------------------------------------------------------------------
# Stage geometry for the flat padded-frame activation layout
# --------------------------------------------------------------------------
class _Geom:
    """Flat layout: rows [0, M) = frame (N, Hp, Wp) row-major, rows [M, Mb)=0."""

    def __init__(self, N, H, W):
        self.N, self.H, self.W = N, H, W
        self.Hp, self.Wp = H + 2, W + 2
        self.M = N * self.Hp * self.Wp
        hp = 32
        while hp < self.Wp + 2:        # halo must cover +-(Wp+1) row offsets
            hp *= 2
        self.hp = hp
        self.tm = _round_up(min(self.M, 4096), hp)
        self.nblk = -(-self.M // self.tm)
        self.Mb = self.nblk * self.tm


def _frame_mask(g):
    """(Mb, 1) f32 constant: 1.0 on interior frame rows, 0.0 on border/trail."""
    fi = np.arange(g.Hp)
    fj = np.arange(g.Wp)
    m = (((fi >= 1) & (fi <= g.H))[:, None] &
         ((fj >= 1) & (fj <= g.W))[None, :])
    m = np.broadcast_to(m[None], (g.N, g.Hp, g.Wp)).reshape(-1).astype(np.float32)
    m = np.pad(m, (0, g.Mb - m.size))
    return jnp.asarray(m.reshape(g.Mb, 1), dtype=jnp.float32)


def _to_frame(x_nhwc, g):
    """dense (N, H, W, C) -> flat (Mb, C) zero-bordered frame."""
    fr = jnp.pad(x_nhwc, ((0, 0), (1, 1), (1, 1), (0, 0)))
    a = fr.reshape(g.N * g.Hp * g.Wp, x_nhwc.shape[-1])
    return jnp.pad(a, ((0, g.Mb - a.shape[0]), (0, 0)))


def _im2col_3ch(x_nhwc, g):
    """First-layer path: (N,H,W,3) -> flat (Mb, 32) bf16 of gathered 3x3 patches."""
    xp = jnp.pad(x_nhwc.astype(jnp.bfloat16), ((0, 0), (1, 1), (1, 1), (0, 0)))
    parts = [jnp.roll(xp, (1 - di, 1 - dj), axis=(1, 2))
             for di in range(3) for dj in range(3)]
    col = jnp.concatenate(parts, axis=-1)                     # (N,Hp,Wp,27)
    col = jnp.pad(col, ((0, 0), (0, 0), (0, 0), (0, 32 - 27)))
    a = col.reshape(g.N * g.Hp * g.Wp, 32)
    return jnp.pad(a, ((0, g.Mb - a.shape[0]), (0, 0)))


def _pool2x2_from_frame(a, g, C):
    """flat frame (Mb, C) -> dense pooled (N, H/2, W/2, C).  Mem-bound XLA glue."""
    fr = a[:g.M].reshape(g.N, g.Hp, g.Wp, C)
    it = fr[:, 1:g.H + 1, 1:g.W + 1, :]
    return it.reshape(g.N, g.H // 2, 2, g.W // 2, 2, C).max(axis=(2, 4))


# --------------------------------------------------------------------------
# 3x3 convolution on the flat padded-frame layout
#   - Cin <= 64: the 9 taps are fused along K into one MXU matmul per block
#   - otherwise: 9 shift-accumulated matmuls (K already fills the MXU)
# --------------------------------------------------------------------------
def _conv_frame_kernel(prev_ref, lo_ref, nxt_ref, w_ref, b_ref, mask_ref, o_ref,
                       *scratch, tm, hp, cin_p, offsets, base, fuse, relu):
    xs_ref = scratch[0]
    # Stage the (tm + 2*hp) row window: xs[j] = in_flat[i*tm - hp + j]
    xs_ref[0:hp, :] = prev_ref[...]
    xs_ref[hp:hp + tm, :] = lo_ref[...]
    xs_ref[hp + tm:hp + 2 * hp + tm - hp + hp, :] = nxt_ref[...]

    if fuse:
        fused_ref = scratch[1]
        for t, off in enumerate(offsets):
            s = hp + off - base
            fused_ref[:, t * cin_p:(t + 1) * cin_p] = xs_ref[s:s + tm, :]
        acc = jnp.dot(fused_ref[...], w_ref[...],
                      preferred_element_type=jnp.float32)
    else:
        acc = None
        for t, off in enumerate(offsets):
            s = hp + off - base
            part = jnp.dot(xs_ref[s:s + tm, :],
                           w_ref[t * cin_p:(t + 1) * cin_p, :],
                           preferred_element_type=jnp.float32)
            acc = part if acc is None else acc + part

    out = acc + b_ref[...]
    if relu:
        out = jnp.maximum(out, 0.0)
    # Re-zero border / trail rows so the frame invariant holds for the next layer.
    out = jnp.where(mask_ref[...] != 0, out, 0.0)
    o_ref[...] = out.astype(o_ref.dtype)


def conv_frame(a, w_packed, bias, mask, g, *, cin_p, cout,
               single_tap=False, relu=True):
    """3x3 / stride-1 / pad-1 conv (or pre-gathered single-tap matmul).

    a:        (Mb, cin_p)       bf16 flat padded-frame activation
    w_packed: (T*cin_p, cout)   bf16, rows ordered (di, dj, ci)
    bias:     (cout,)           f32
    mask:     (Mb, 1)           f32 interior mask
    """
    Mb, cp = a.shape
    assert cp == cin_p and Mb == g.Mb, (a.shape, cin_p, g.Mb)
    tm, hp, nblk = g.tm, g.hp, g.nblk
    ratio = tm // hp
    base = g.Wp + 1
    if single_tap:
        offsets = (base,)
    else:
        offsets = tuple(di * g.Wp + dj for di in range(3) for dj in range(3))
    T = len(offsets)
    assert w_packed.shape == (T * cin_p, cout), (w_packed.shape, T, cin_p, cout)
    fuse = (T > 1) and (cin_p <= 64)

    bias2 = bias.reshape(1, cout).astype(jnp.float32)

    prev_map = lambda i: (jnp.maximum(i * ratio - 1, 0), 0)
    lo_map = lambda i: (i, 0)
    nxt_map = lambda i: (jnp.minimum((i + 1) * ratio, nblk * ratio - 1), 0)

    scratch = [pltpu.VMEM((tm + 2 * hp, cin_p), a.dtype)]
    if fuse:
        scratch.append(pltpu.VMEM((tm, T * cin_p), a.dtype))

    return pl.pallas_call(
        functools.partial(_conv_frame_kernel, tm=tm, hp=hp, cin_p=cin_p,
                          offsets=offsets, base=base, fuse=fuse, relu=relu),
        out_shape=jax.ShapeDtypeStruct((Mb, cout), a.dtype),
        grid_spec=pltpu.PrefetchScalarGridSpec(
            num_scalar_prefetch=0,
            grid=(nblk,),
            in_specs=[
                pl.BlockSpec((hp, cin_p), prev_map),
                pl.BlockSpec((tm, cin_p), lo_map),
                pl.BlockSpec((hp, cin_p), nxt_map),
                pl.BlockSpec((T * cin_p, cout), lambda i: (0, 0)),  # resident
                pl.BlockSpec((1, cout), lambda i: (0, 0)),
                pl.BlockSpec((tm, 1), lambda i: (i, 0)),
            ],
            out_specs=pl.BlockSpec((tm, cout), lambda i: (i, 0)),
            scratch_shapes=scratch,
        ),
        compiler_params=_cparams(("parallel",)),
    )(a, a, a, w_packed, bias2, mask)


# --------------------------------------------------------------------------
# Tiled matmul (bf16 operands, f32 acc) with fused bias (+ BatchNorm + ReLU)
# --------------------------------------------------------------------------
def _matmul_kernel(a_ref, b_ref, bias_ref, gamma_ref, beta_ref, o_ref, acc_ref,
                   *, relu, bn, rows, eps):
    k = pl.program_id(2)

    @pl.when(k == 0)
    def _():
        acc_ref[...] = jnp.zeros_like(acc_ref)

    acc_ref[...] += jnp.dot(a_ref[...], b_ref[...],
                            preferred_element_type=jnp.float32)

    @pl.when(k == pl.num_programs(2) - 1)
    def _():
        out = acc_ref[...] + bias_ref[...]
        if bn:
            # training-mode batch statistics over the `rows` valid batch rows
            v = out[0:rows, :]
            mean = jnp.mean(v, axis=0, keepdims=True)
            var = jnp.mean(jnp.square(v - mean), axis=0, keepdims=True)
            out = (out - mean) * lax.rsqrt(var + eps) * gamma_ref[...] + beta_ref[...]
        if relu:
            out = jnp.maximum(out, 0.0)
        o_ref[...] = out.astype(o_ref.dtype)


def matmul_bias(a, b, bias, *, gamma=None, beta=None, relu=False, n_valid=None,
                tk_cap=2048, tn_cap=2048, eps=1e-5):
    """(M,K) @ (K,N) + bias [-> BN -> ReLU] -> f32.  `b` is pre-packed bf16."""
    a = a.astype(jnp.bfloat16)
    M, K = a.shape
    K2, N = b.shape
    assert K == K2, (K, K2)
    n_valid = N if n_valid is None else n_valid
    bn = gamma is not None

    tm = min(512, _round_up(M, 8))
    tk = _pick_tile(K, tk_cap)
    tn = _pick_tile(N, tn_cap)
    Mp, Kp, Np = _round_up(M, tm), _round_up(K, tk), _round_up(N, tn)
    if bn:
        assert Mp == tm, "fused BN assumes the batch fits a single row tile"

    if (Mp, Kp) != (M, K):
        a = jnp.pad(a, ((0, Mp - M), (0, Kp - K)))
    if (Kp, Np) != (K, N):                 # never taken for pre-packed weights
        b = jnp.pad(b, ((0, Kp - K), (0, Np - N)))
    bias2 = jnp.pad(bias.reshape(1, N).astype(jnp.float32), ((0, 0), (0, Np - N)))
    if bn:
        gamma2 = jnp.pad(gamma.reshape(1, N).astype(jnp.float32),
                         ((0, 0), (0, Np - N)), constant_values=1.0)
        beta2 = jnp.pad(beta.reshape(1, N).astype(jnp.float32),
                        ((0, 0), (0, Np - N)))
    else:
        gamma2 = jnp.ones((1, Np), jnp.float32)
        beta2 = jnp.zeros((1, Np), jnp.float32)

    grid = (Mp // tm, Np // tn, Kp // tk)
    out = pl.pallas_call(
        functools.partial(_matmul_kernel, relu=relu, bn=bn, rows=M, eps=eps),
        out_shape=jax.ShapeDtypeStruct((Mp, Np), jnp.float32),
        grid_spec=pltpu.PrefetchScalarGridSpec(
            num_scalar_prefetch=0,
            grid=grid,
            in_specs=[
                pl.BlockSpec((tm, tk), lambda i, j, k: (i, k)),
                # classifier/upsample layers are pure weight streaming:
                # deep-buffer the large B tiles to keep HBM saturated.
                pl.BlockSpec((tk, tn), lambda i, j, k: (k, j),
                             pipeline_mode=pl.Buffered(3)),
                pl.BlockSpec((1, tn), lambda i, j, k: (0, j)),
                pl.BlockSpec((1, tn), lambda i, j, k: (0, j)),
                pl.BlockSpec((1, tn), lambda i, j, k: (0, j)),
            ],
            out_specs=pl.BlockSpec((tm, tn), lambda i, j, k: (i, j)),
            scratch_shapes=[pltpu.VMEM((tm, tn), jnp.float32)],
        ),
        compiler_params=_cparams(("parallel", "parallel", "arbitrary")),
    )(a, b, bias2, gamma2, beta2)
    return out[:M, :n_valid]


# --------------------------------------------------------------------------
# Parameter init: all weight layout work (transpose / pack / pad / bf16 cast)
# happens exactly once here.
# --------------------------------------------------------------------------
def _pack_conv3x3_weight(w, cin_p):
    """PyTorch (Cout, Cin, 3, 3) -> (9*cin_p, Cout) bf16, rows (di, dj, ci)."""
    cout, cin = w.shape[0], w.shape[1]
    wp = jnp.transpose(w, (2, 3, 1, 0)).reshape(9, cin, cout)
    if cin_p > cin:
        wp = jnp.pad(wp, ((0, 0), (0, cin_p - cin), (0, 0)))
    return wp.reshape(9 * cin_p, cout).astype(jnp.bfloat16)


def _pack_first_conv_weight(w):
    """(Cout, 3, 3, 3) -> (32, Cout) bf16: im2col K = (di, dj, ci), 27 -> 32."""
    cout = w.shape[0]
    wp = jnp.transpose(w, (2, 3, 1, 0)).reshape(27, cout)
    return jnp.pad(wp, ((0, 32 - 27), (0, 0))).astype(jnp.bfloat16)


def init_params(key):
    convs = [c for c in VGG16_CFG if c != 'M']
    keys = jax.random.split(key, len(convs) + 3)
    params = {'features': []}
    for idx, (cin, cout) in enumerate(convs):
        std = (2.0 / (cin * 9)) ** 0.5
        w = jax.random.normal(keys[idx], (cout, cin, 3, 3), jnp.float32) * std
        b = jnp.zeros((cout,), jnp.float32)
        wp = _pack_first_conv_weight(w) if idx == 0 else _pack_conv3x3_weight(w, cin)
        params['features'].append((wp, b))

    k1, k2, k3 = keys[len(convs):]
    # classifier: Conv2d(512,4096,7) -> BN -> ReLU -> Conv2d(4096,4096,1) -> BN -> ReLU
    w1 = jax.random.normal(k1, (4096, 512, 7, 7), jnp.float32) * (2.0 / (512 * 49)) ** 0.5
    params['cls1_w'] = jnp.transpose(w1, (2, 3, 1, 0)).reshape(49 * 512, 4096).astype(jnp.bfloat16)
    params['cls1_b'] = jnp.zeros((4096,), jnp.float32)
    params['bn1_gamma'] = jnp.ones((4096,), jnp.float32)
    params['bn1_beta'] = jnp.zeros((4096,), jnp.float32)

    w2 = jax.random.normal(k2, (4096, 4096, 1, 1), jnp.float32) * (2.0 / 4096) ** 0.5
    params['cls2_w'] = jnp.transpose(w2[:, :, 0, 0], (1, 0)).astype(jnp.bfloat16)
    params['cls2_b'] = jnp.zeros((4096,), jnp.float32)
    params['bn2_gamma'] = jnp.ones((4096,), jnp.float32)
    params['bn2_beta'] = jnp.zeros((4096,), jnp.float32)

    # upsample: ConvTranspose2d(4096, 7, kernel=44, stride=52).  For a 1x1
    # spatial input this is a (4096, 7*44*44) matmul; pre-pad the lane dim to a
    # 2048-divisible width so forward never pads the 110+ MB weight and the
    # streaming matmul can use 2048-wide N tiles.
    w3 = jax.random.normal(k3, (4096, NUM_CLASSES, UP_K, UP_K), jnp.float32) * (1.0 / 4096) ** 0.5
    up_np = _round_up(UP_N, 2048)                     # 14336
    params['up_w'] = jnp.pad(w3.reshape(4096, UP_N),
                             ((0, 0), (0, up_np - UP_N))).astype(jnp.bfloat16)
    up_b = jnp.zeros((NUM_CLASSES,), jnp.float32)
    params['up_b'] = jnp.pad(jnp.repeat(up_b, UP_K * UP_K), (0, up_np - UP_N))
    return params


# --------------------------------------------------------------------------
# Forward
# --------------------------------------------------------------------------
def forward(params, x_nchw):
    N = x_nchw.shape[0]
    assert x_nchw.shape[1] == 3
    H = W = x_nchw.shape[2]
    assert x_nchw.shape[2] == x_nchw.shape[3]
    x = jnp.transpose(x_nchw, (0, 2, 3, 1))               # NHWC f32

    g = _Geom(N, H, W)
    mask = _frame_mask(g)
    a = _im2col_3ch(x, g)                                 # (Mb, 32) bf16

    fi = 0
    C = 3
    feat = None
    for idx, c in enumerate(VGG16_CFG):
        if c == 'M':
            pooled = _pool2x2_from_frame(a, g, C)          # (N, H/2, W/2, C)
            H //= 2
            W //= 2
            if idx == len(VGG16_CFG) - 1:
                feat = pooled                              # final 7x7 features
            else:
                g = _Geom(N, H, W)
                mask = _frame_mask(g)
                a = _to_frame(pooled, g)
        else:
            cin, cout = c
            wp, b = params['features'][fi]
            fi += 1
            first = (fi == 1)
            a = conv_frame(a, wp, b, mask, g,
                           cin_p=(32 if first else cin), cout=cout,
                           single_tap=first, relu=True)
            C = cout

    Nf, Hf, Wf, Cf = feat.shape
    # TODO(synk): only the 224x224 input case (7x7 feature map -> 1x1
    # classifier output) is supported; the general strided ConvTranspose2d
    # (stride-52 gaps, >1x1 classifier output) is not implemented.
    assert (Hf, Wf, Cf) == (7, 7, 512), (Hf, Wf, Cf)
    z = feat.reshape(Nf, Hf * Wf * Cf)

    y = matmul_bias(z, params['cls1_w'], params['cls1_b'],
                    gamma=params['bn1_gamma'], beta=params['bn1_beta'], relu=True)
    y = matmul_bias(y, params['cls2_w'], params['cls2_b'],
                    gamma=params['bn2_gamma'], beta=params['bn2_beta'], relu=True)
    up = matmul_bias(y, params['up_w'], params['up_b'], relu=False, n_valid=UP_N)
    return up.reshape(Nf, NUM_CLASSES, UP_K, UP_K)


# --------------------------------------------------------------------------
# Self-checks + full forward
# --------------------------------------------------------------------------
def _conv_ref(x_f32, w, b, relu=True):
    out = lax.conv_general_dilated(
        x_f32, jnp.transpose(w, (2, 3, 1, 0)),
        window_strides=(1, 1), padding=((1, 1), (1, 1)),
        dimension_numbers=("NHWC", "HWIO", "NHWC"),
        precision=lax.Precision.HIGHEST)
    out = out + b.reshape(1, 1, 1, -1)
    return jnp.maximum(out, 0.0) if relu else out


def _interior(flat, g, cout):
    fr = flat[:g.M].reshape(g.N, g.Hp, g.Wp, cout)
    return fr[:, 1:g.H + 1, 1:g.W + 1, :].astype(jnp.float32)


if __name__ == "__main__":
    key = jax.random.PRNGKey(0)
    pkey, xkey, tkey = jax.random.split(key, 3)
    ks = jax.random.split(tkey, 12)

    def bf(v):
        return v.astype(jnp.bfloat16).astype(jnp.float32)

    # ---- test 1: first-layer path (XLA im2col + single-tap matmul) ----
    x0 = jax.random.normal(ks[0], (1, 8, 8, 3), jnp.float32)
    w0 = jax.random.normal(ks[1], (16, 3, 3, 3), jnp.float32) * 0.3
    b0 = jax.random.normal(ks[2], (16,), jnp.float32) * 0.1
    g0 = _Geom(1, 8, 8)
    got = conv_frame(_im2col_3ch(x0, g0), _pack_first_conv_weight(w0), b0,
                     _frame_mask(g0), g0, cin_p=32, cout=16, single_tap=True)
    ref = _conv_ref(bf(x0), bf(w0), b0)
    assert bool(jnp.allclose(_interior(got, g0, 16), ref,
                             rtol=5e-2, atol=5e-2)), "first-conv mismatch"

    # ---- test 2: fused-tap path, 2-layer chain (checks border-zero invariant) ----
    x1 = jax.random.normal(ks[3], (1, 8, 8, 16), jnp.float32)
    wA = jax.random.normal(ks[4], (32, 16, 3, 3), jnp.float32) * 0.15
    bA = jax.random.normal(ks[5], (32,), jnp.float32) * 0.1
    wB = jax.random.normal(ks[6], (32, 32, 3, 3), jnp.float32) * 0.15
    bB = jax.random.normal(ks[7], (32,), jnp.float32) * 0.1
    g1 = _Geom(1, 8, 8)
    m1 = _frame_mask(g1)
    h = _to_frame(x1.astype(jnp.bfloat16), g1)
    h = conv_frame(h, _pack_conv3x3_weight(wA, 16), bA, m1, g1, cin_p=16, cout=32)
    h = conv_frame(h, _pack_conv3x3_weight(wB, 32), bB, m1, g1, cin_p=32, cout=32)
    ref = _conv_ref(_conv_ref(bf(x1), bf(wA), bA), bf(wB), bB)
    assert bool(jnp.allclose(_interior(h, g1, 32), ref,
                             rtol=5e-2, atol=1e-1)), "fused conv chain mismatch"

    # ---- test 3: unfused (large-Cin) path ----
    x2 = jax.random.normal(ks[8], (1, 8, 8, 128), jnp.float32)
    wC = jax.random.normal(ks[9], (64, 128, 3, 3), jnp.float32) * 0.05
    bC = jax.random.normal(ks[10], (64,), jnp.float32) * 0.1
    g2 = _Geom(1, 8, 8)
    got = conv_frame(_to_frame(x2.astype(jnp.bfloat16), g2),
                     _pack_conv3x3_weight(wC, 128), bC, _frame_mask(g2), g2,
                     cin_p=128, cout=64)
    ref = _conv_ref(bf(x2), bf(wC), bC)
    assert bool(jnp.allclose(_interior(got, g2, 64), ref,
                             rtol=5e-2, atol=5e-2)), "unfused conv mismatch"

    # ---- full VGG16-FCN32s forward ----
    params = init_params(pkey)
    # Smallest input consistent with the module: 224x224
    # (features /32 -> 7x7, classifier 7x7 conv -> 1x1, upsample -> 44x44).
    x = jax.random.normal(xkey, (2, 3, 224, 224), jnp.float32)

    fwd = jax.jit(forward)
    out = jax.block_until_ready(fwd(params, x))
    assert out.shape == (2, NUM_CLASSES, 44, 44), out.shape
    assert out.dtype == jnp.float32
    assert bool(jnp.all(jnp.isfinite(out)))
    print("KERNEL_OK")
</pallas_src>

<mosaic_0001>
module attributes {stable_mosaic.version = 11 : i64} {
  func.func @_conv_frame_kernel(%arg0: i32, %arg1: memref<32x32xbf16, #tpu.memory_space<vmem>>, %arg2: memref<128x32xbf16, #tpu.memory_space<vmem>>, %arg3: memref<32x32xbf16, #tpu.memory_space<vmem>>, %arg4: memref<32x16xbf16, #tpu.memory_space<vmem>>, %arg5: memref<1x16xf32, #tpu.memory_space<vmem>>, %arg6: memref<128x1xf32, #tpu.memory_space<vmem>>, %arg7: memref<128x16xbf16, #tpu.memory_space<vmem>>, %arg8: memref<192x32xbf16, #tpu.memory_space<vmem>>) attributes {dimension_semantics = [#tpu.dimension_semantics<parallel>], iteration_bounds = array<i64: 1>, scalar_prefetch = 0 : i64, scratch_operands = 1 : i64, tpu.core_type = #tpu.core_type<tc>, window_params = [{transform_indices = @transform_0, window_bounds = array<i64: 32, 32>}, {transform_indices = @transform_1, window_bounds = array<i64: 128, 32>}, {transform_indices = @transform_2, window_bounds = array<i64: 32, 32>}, {pipeline_mode = #tpu.pipeline_mode<synchronous>, transform_indices = @transform_3, window_bounds = array<i64: 32, 16>}, {pipeline_mode = #tpu.pipeline_mode<synchronous>, transform_indices = @transform_4, window_bounds = array<i64: 1, 16>}, {transform_indices = @transform_5, window_bounds = array<i64: 128, 1>}, {transform_indices = @transform_6, window_bounds = array<i64: 128, 16>}]} {
    %c0 = arith.constant 0 : index
    %c0_0 = arith.constant 0 : index
    %0 = vector.load %arg1[%c0, %c0_0] : memref<32x32xbf16, #tpu.memory_space<vmem>>, vector<32x32xbf16>
    %c0_1 = arith.constant 0 : index
    %c0_2 = arith.constant 0 : index
    %1 = vector.load %arg8[%c0_1, %c0_2] : memref<192x32xbf16, #tpu.memory_space<vmem>>, vector<32x32xbf16>
    tpu.vector_store %arg8[%c0_1, %c0_2], %0 {strides = array<i32>} : memref<192x32xbf16, #tpu.memory_space<vmem>>, vector<32x32xbf16>,
    %c0_3 = arith.constant 0 : index
    %c0_4 = arith.constant 0 : index
    %2 = vector.load %arg2[%c0_3, %c0_4] : memref<128x32xbf16, #tpu.memory_space<vmem>>, vector<128x32xbf16>
    %c32 = arith.constant 32 : index
    %c0_5 = arith.constant 0 : index
    %3 = vector.load %arg8[%c32, %c0_5] : memref<192x32xbf16, #tpu.memory_space<vmem>>, vector<128x32xbf16>
    tpu.vector_store %arg8[%c32, %c0_5], %2 {strides = array<i32>} : memref<192x32xbf16, #tpu.memory_space<vmem>>, vector<128x32xbf16>,
    %c0_6 = arith.constant 0 : index
    %c0_7 = arith.constant 0 : index
    %4 = vector.load %arg3[%c0_6, %c0_7] : memref<32x32xbf16, #tpu.memory_space<vmem>>, vector<32x32xbf16>
    %c160 = arith.constant 160 : index
    %c0_8 = arith.constant 0 : index
    %5 = vector.load %arg8[%c160, %c0_8] : memref<192x32xbf16, #tpu.memory_space<vmem>>, vector<32x32xbf16>
    tpu.vector_store %arg8[%c160, %c0_8], %4 {strides = array<i32>} : memref<192x32xbf16, #tpu.memory_space<vmem>>, vector<32x32xbf16>,
    %c32_9 = arith.constant 32 : index
    %c0_10 = arith.constant 0 : index
    %6 = vector.load %arg8[%c32_9, %c0_10] : memref<192x32xbf16, #tpu.memory_space<vmem>>, vector<128x32xbf16>
    %c0_11 = arith.constant 0 : index
    %c0_12 = arith.constant 0 : index
    %7 = vector.load %arg4[%c0_11, %c0_12] : memref<32x16xbf16, #tpu.memory_space<vmem>>, vector<32x16xbf16>
    %cst = arith.constant dense<0.000000e+00> : vector<128x16xf32>
    %8 = tpu.matmul %6, %7, %cst {dimension_numbers = #tpu.dot_dimension_numbers<[1], [0], [0], [1], [0, 0, 1, 1], [], []>} : vector<128x32xbf16>, vector<32x16xbf16>, vector<128x16xf32> -> vector<128x16xf32>
    %c0_13 = arith.constant 0 : index
    %c0_14 = arith.constant 0 : index
    %9 = vector.load %arg5[%c0_13, %c0_14] : memref<1x16xf32, #tpu.memory_space<vmem>>, vector<1x16xf32>
    %10 = vector.broadcast %9 : vector<1x16xf32> to vector<128x16xf32>
    %11 = arith.addf %8, %10 : vector<128x16xf32>
    %cst_15 = arith.constant 0.000000e+00 : f32
    %12 = vector.broadcast %cst_15 : f32 to vector<128x16xf32>
    %13 = arith.maximumf %11, %12 : vector<128x16xf32>
    %c0_16 = arith.constant 0 : index
    %c0_17 = arith.constant 0 : index
    %14 = vector.load %arg6[%c0_16, %c0_17] : memref<128x1xf32, #tpu.memory_space<vmem>>, vector<128x1xf32>
    %cst_18 = arith.constant 0.000000e+00 : f32
    %15 = vector.broadcast %cst_18 : f32 to vector<128x1xf32>
    %16 = arith.cmpf one, %14, %15 : vector<128x1xf32>
    %cst_19 = arith.constant 0.000000e+00 : f32
    %17 = vector.shape_cast %16 : vector<128x1xi1> to vector<128x1xi1>
    %18 = vector.broadcast %17 : vector<128x1xi1> to vector<128x16xi1>
    %19 = vector.broadcast %cst_19 : f32 to vector<128x16xf32>
    %20 = arith.select %18, %13, %19 : vector<128x16xi1>, vector<128x16xf32>
    %21 = arith.truncf %20 : vector<128x16xf32> to vector<128x16xbf16>
    %c0_20 = arith.constant 0 : index
    %c0_21 = arith.constant 0 : index
    %22 = vector.load %arg7[%c0_20, %c0_21] : memref<128x16xbf16, #tpu.memory_space<vmem>>, vector<128x16xbf16>
    tpu.vector_store %arg7[%c0_20, %c0_21], %21 {strides = array<i32>} : memref<128x16xbf16, #tpu.memory_space<vmem>>, vector<128x16xbf16>,
    return
  }
  func.func @transform_0(%arg0: i32) -> (i32, i32) {
    %c4_i32 = arith.constant 4 : i32
    %0 = arith.muli %arg0, %c4_i32 : i32
    %c1_i32 = arith.constant 1 : i32
    %1 = arith.subi %0, %c1_i32 : i32
    %c0_i32 = arith.constant 0 : i32
    %2 = arith.maxsi %1, %c0_i32 : i32
    %c0_i32_0 = arith.constant 0 : i32
    %c0_i32_1 = arith.constant 0 : i32
    return %2, %c0_i32_0 : i32, i32
  }
  func.func @transform_1(%arg0: i32) -> (i32, i32) {
    %c0_i32 = arith.constant 0 : i32
    %c0_i32_0 = arith.constant 0 : i32
    return %arg0, %c0_i32 : i32, i32
  }
  func.func @transform_2(%arg0: i32) -> (i32, i32) {
    %c1_i32 = arith.constant 1 : i32
    %0 = arith.addi %arg0, %c1_i32 : i32
    %c4_i32 = arith.constant 4 : i32
    %1 = arith.muli %0, %c4_i32 : i32
    %c3_i32 = arith.constant 3 : i32
    %2 = arith.minsi %1, %c3_i32 : i32
    %c0_i32 = arith.constant 0 : i32
    %c0_i32_0 = arith.constant 0 : i32
    return %2, %c0_i32 : i32, i32
  }
  func.func @transform_3(%arg0: i32) -> (i32, i32) {
    %c0_i32 = arith.constant 0 : i32
    %c0_i32_0 = arith.constant 0 : i32
    %c0_i32_1 = arith.constant 0 : i32
    return %c0_i32, %c0_i32_0 : i32, i32
  }
  func.func @transform_4(%arg0: i32) -> (i32, i32) {
    %c0_i32 = arith.constant 0 : i32
    %c0_i32_0 = arith.constant 0 : i32
    %c0_i32_1 = arith.constant 0 : i32
    return %c0_i32, %c0_i32_0 : i32, i32
  }
  func.func @transform_5(%arg0: i32) -> (i32, i32) {
    %c0_i32 = arith.constant 0 : i32
    %c0_i32_0 = arith.constant 0 : i32
    return %arg0, %c0_i32 : i32, i32
  }
  func.func @transform_6(%arg0: i32) -> (i32, i32) {
    %c0_i32 = arith.constant 0 : i32
    %c0_i32_0 = arith.constant 0 : i32
    return %arg0, %c0_i32 : i32, i32
  }
}

</mosaic_0001>

<llo_original>
// kernel: tpu_custom_call.1
$region0: #{tpu_custom_call.1}
  #allocation0 [shape = 'u32[]', space=smem, size = 0x4, offset = 0x4, fixed_abs, tag = 'smem constant byte address 0x4 - core index']
  #allocation1 [shape = 'u32[144,128]{1,0:T(1,128)}', space=vmem, size = 0x12000, scoped, tag = 'internal scratch']
  #allocation2 [shape = 'bf16[192,32]{1,0:T(16,128)(2,1)}', space=vmem, size = 0xc000, scoped, tag = 'scratch operand']
  %s0 = inlined_call_operand.vmem [shape: bf16[128,32], index: 0, kind: input, shape index: {}]
  %s1 = inlined_call_operand.vmem [shape: bf16[128,32], index: 1, kind: input, shape index: {}]
  %s2 = inlined_call_operand.vmem [shape: bf16[128,32], index: 2, kind: input, shape index: {}]
  %s3 = inlined_call_operand.vmem [shape: bf16[32,16], index: 3, kind: input, shape index: {}]
  %s4 = inlined_call_operand.vmem [shape: f32[1,16], index: 4, kind: input, shape index: {}]
  %s5 = inlined_call_operand.vmem [shape: f32[128,1], index: 5, kind: input, shape index: {}]
  %s6 = inlined_call_operand.vmem [shape: bf16[128,16], index: 6, kind: output, shape index: {}]
  %s7 = sld [smem:[#allocation0]]
  $region34: #{tpu_custom_call.1} parent=0
    _
  %s9 = ssub.s32 1, %s7
  %s10 = scalar_select 0, %s9, %s7
  // Predicated region
  $region2: #{tpu_custom_call.1} parent=0 // pred_check
    _
  $region3: #{tpu_custom_call.1} parent=0 // pred_check_branch
    %12 = sbr.rel (0) target = $region5
  $region4: #{tpu_custom_call.1} parent=0 // pred_region
    %s13 = smul.u32 0, 4
    %s14 = ssub.s32 %s13, 1
    %p15 = scmp.gt.s32.totalorder %s14, 0
    %s16 = scalar_select %p15, %s14, 0
    %s17 = smul.u32 4, %s16
    %p18 = scmp.lt.s32.totalorder %s17, 15
    %s19 = scalar_select %p18, %s17, 15
    %s20 = smul.addr %s19, 4
    %s21 = scalar_lea.vmem %s0, %s20
    %s22 = smul.u32 0, 4
    %s23 = ssub.s32 %s22, 1
    %p24 = scmp.gt.s32.totalorder %s23, 0
    %s25 = scalar_select %p24, %s23, 0
    %s26 = smul.u32 4, %s25
  $region5: #{tpu_custom_call.1} parent=0 // pred_fallthru
    _
  // Predicated region
  $region6: #{tpu_custom_call.1} parent=0 // pred_check
    _
  $region7: #{tpu_custom_call.1} parent=0 // pred_check_branch
    %28 = sbr.rel (0) target = $region9
  $region8: #{tpu_custom_call.1} parent=0 // pred_region
    _
  $region9: #{tpu_custom_call.1} parent=0 // pred_fallthru
    _
  // Predicated region
  $region10: #{tpu_custom_call.1} parent=0 // pred_check
    _
  $region11: #{tpu_custom_call.1} parent=0 // pred_check_branch
    %30 = sbr.rel (0) target = $region13
  $region12: #{tpu_custom_call.1} parent=0 // pred_region
    %s31 = sadd.s32 0, 1
    %s32 = smul.u32 %s31, 4
    %p33 = scmp.lt.s32.totalorder %s32, 3
    %s34 = scalar_select %p33, %s32, 3
    %s35 = smul.u32 4, %s34
    %p36 = scmp.lt.s32.totalorder %s35, 15
    %s37 = scalar_select %p36, %s35, 15
    %s38 = smul.addr %s37, 4
    %s39 = scalar_lea.vmem %s2, %s38
    %s40 = sadd.s32 0, 1
    %s41 = smul.u32 %s40, 4
    %p42 = scmp.lt.s32.totalorder %s41, 3
    %s43 = scalar_select %p42, %s41, 3
    %s44 = smul.u32 4, %s43
  $region13: #{tpu_custom_call.1} parent=0 // pred_fallthru
    _
  // Predicated region
  $region14: #{tpu_custom_call.1} parent=0 // pred_check
    _
  $region15: #{tpu_custom_call.1} parent=0 // pred_check_branch
    %46 = sbr.rel (0) target = $region17
  $region16: #{tpu_custom_call.1} parent=0 // pred_region
    _
  $region17: #{tpu_custom_call.1} parent=0 // pred_fallthru
    _
  // Predicated region
  $region18: #{tpu_custom_call.1} parent=0 // pred_check
    _
  $region19: #{tpu_custom_call.1} parent=0 // pred_check_branch
    %48 = sbr.rel (0) target = $region21
  $region20: #{tpu_custom_call.1} parent=0 // pred_region
    _
  $region21: #{tpu_custom_call.1} parent=0 // pred_fallthru
    _
  // Predicated region
  $region22: #{tpu_custom_call.1} parent=0 // pred_check
    _
  $region23: #{tpu_custom_call.1} parent=0 // pred_check_branch
    %50 = sbr.rel (0) target = $region25
  $region24: #{tpu_custom_call.1} parent=0 // pred_region
    _
  $region25: #{tpu_custom_call.1} parent=0 // pred_fallthru
    _
  %s51 = smul.u32 0, 4
  %s52 = ssub.s32 %s51, 1
  %p53 = scmp.gt.s32.totalorder %s52, 0
  %s54 = scalar_select %p53, %s52, 0
  %s55 = smul.u32 4, %s54
  %p56 = scmp.lt.s32.totalorder %s55, 15
  %s57 = scalar_select %p56, %s55, 15
  %s58 = smul.addr %s57, 4
  %s59 = scalar_lea.vmem %s0, %s58
  %s60 = sadd.s32 0, 1
  %s61 = smul.u32 %s60, 4
  %p62 = scmp.lt.s32.totalorder %s61, 3
  %s63 = scalar_select %p62, %s61, 3
  %s64 = smul.u32 4, %s63
  %p65 = scmp.lt.s32.totalorder %s64, 15
  %s66 = scalar_select %p65, %s64, 15
  %s67 = smul.addr %s66, 4
  %s68 = scalar_lea.vmem %s2, %s67
  %s69 = smul.u32 0, 4
  %s70 = ssub.s32 %s69, 1
  %p71 = scmp.gt.s32.totalorder %s70, 0
  %s72 = scalar_select %p71, %s70, 0
  %s73 = smul.u32 4, %s72
  %p74 = scmp.lt.s32.totalorder %s73, 15
  %s75 = scalar_select %p74, %s73, 15
  %s76 = smul.addr %s75, 4
  %s77 = scalar_lea.vmem %s0, %s76
  %s78 = smul.u32 0, 4
  %s79 = ssub.s32 %s78, 1
  %p80 = scmp.gt.s32.totalorder %s79, 0
  %s81 = scalar_select %p80, %s79, 0
  %s82 = smul.u32 4, %s81
  %s83 = sadd.s32 0, 1
  %s84 = smul.u32 %s83, 4
  %p85 = scmp.lt.s32.totalorder %s84, 3
  %s86 = scalar_select %p85, %s84, 3
  %s87 = smul.u32 4, %s86
  %p88 = scmp.lt.s32.totalorder %s87, 15
  %s89 = scalar_select %p88, %s87, 15
  %s90 = smul.addr %s89, 4
  %s91 = scalar_lea.vmem %s2, %s90
  %s92 = sadd.s32 0, 1
  %s93 = smul.u32 %s92, 4
  %p94 = scmp.lt.s32.totalorder %s93, 3
  %s95 = scalar_select %p94, %s93, 3
  %s96 = smul.u32 4, %s95
  %v98 = vld [vmem:[%s77] sm:$0xf]
  %v99 = vld [vmem:[%s77 + $0x4] sm:$0xf]
  %v100 = vld [vmem:[%s77 + $0x8] sm:$0xf]
  %v101 = vld [vmem:[%s77 + $0xc] sm:$0xf]
  %v106 = vunpack.c.l.b16 %v98
  %v107 = vunpack.c.l.b16 %v99
  %v108 = vunpack.c.l.b16 %v100
  %v109 = vunpack.c.l.b16 %v101
  %v110 = vpack.c.b16 %v107, %v106
  %v111 = vpack.c.b16 %v109, %v108
  %vm114 = vcmask 261120
  %115 = vst.msk [vmem:[#allocation2] sm:$0xff] %vm114, %v110
  %116 = vst.msk [vmem:[#allocation2 + $0x8] sm:$0xff] %vm114, %v111
  %v117 = vld [vmem:[%s1] sm:$0xf]
  %v118 = vld [vmem:[%s1 + $0x4] sm:$0xf]
  %v119 = vld [vmem:[%s1 + $0x8] sm:$0xf]
  %v120 = vld [vmem:[%s1 + $0xc] sm:$0xf]
  %v121 = vld [vmem:[%s1 + $0x10] sm:$0xf]
  %v122 = vld [vmem:[%s1 + $0x14] sm:$0xf]
  %v123 = vld [vmem:[%s1 + $0x18] sm:$0xf]
  %v124 = vld [vmem:[%s1 + $0x1c] sm:$0xf]
  %v125 = vld [vmem:[%s1 + $0x20] sm:$0xf]
  %v126 = vld [vmem:[%s1 + $0x24] sm:$0xf]
  %v127 = vld [vmem:[%s1 + $0x28] sm:$0xf]
  %v128 = vld [vmem:[%s1 + $0x2c] sm:$0xf]
  %v129 = vld [vmem:[%s1 + $0x30] sm:$0xf]
  %v130 = vld [vmem:[%s1 + $0x34] sm:$0xf]
  %v131 = vld [vmem:[%s1 + $0x38] sm:$0xf]
  %v132 = vld [vmem:[%s1 + $0x3c] sm:$0xf]
  %v149 = vunpack.c.l.b16 %v117
  %v150 = vunpack.c.l.b16 %v118
  %v151 = vunpack.c.l.b16 %v119
  %v152 = vunpack.c.l.b16 %v120
  %v153 = vunpack.c.l.b16 %v121
  %v154 = vunpack.c.l.b16 %v122
  %v155 = vunpack.c.l.b16 %v123
  %v156 = vunpack.c.l.b16 %v124
  %v157 = vunpack.c.l.b16 %v125
  %v158 = vunpack.c.l.b16 %v126
  %v159 = vunpack.c.l.b16 %v127
  %v160 = vunpack.c.l.b16 %v128
  %v161 = vunpack.c.l.b16 %v129
  %v162 = vunpack.c.l.b16 %v130
  %v163 = vunpack.c.l.b16 %v131
  %v164 = vunpack.c.l.b16 %v132
  %v165 = vpack.c.b16 %v150, %v149
  %v166 = vpack.c.b16 %v152, %v151
  %v167 = vpack.c.b16 %v154, %v153
  %v168 = vpack.c.b16 %v156, %v155
  %v169 = vpack.c.b16 %v158, %v157
  %v170 = vpack.c.b16 %v160, %v159
  %v171 = vpack.c.b16 %v162, %v161
  %v172 = vpack.c.b16 %v164, %v163
  %181 = vst.msk [vmem:[#allocation2 + $0x10] sm:$0xff] %vm114, %v165
  %182 = vst.msk [vmem:[#allocation2 + $0x18] sm:$0xff] %vm114, %v166
  %183 = vst.msk [vmem:[#allocation2 + $0x20] sm:$0xff] %vm114, %v167
  %184 = vst.msk [vmem:[#allocation2 + $0x28] sm:$0xff] %vm114, %v168
  %185 = vst.msk [vmem:[#allocation2 + $0x30] sm:$0xff] %vm114, %v169
  %186 = vst.msk [vmem:[#allocation2 + $0x38] sm:$0xff] %vm114, %v170
  %187 = vst.msk [vmem:[#allocation2 + $0x40] sm:$0xff] %vm114, %v171
  %188 = vst.msk [vmem:[#allocation2 + $0x48] sm:$0xff] %vm114, %v172
  %v189 = vld [vmem:[%s91] sm:$0xf]
  %v190 = vld [vmem:[%s91 + $0x4] sm:$0xf]
  %v191 = vld [vmem:[%s91 + $0x8] sm:$0xf]
  %v192 = vld [vmem:[%s91 + $0xc] sm:$0xf]
  %v197 = vunpack.c.l.b16 %v189
  %v198 = vunpack.c.l.b16 %v190
  %v199 = vunpack.c.l.b16 %v191
  %v200 = vunpack.c.l.b16 %v192
  %v201 = vpack.c.b16 %v198, %v197
  %v202 = vpack.c.b16 %v200, %v199
  %205 = vst.msk [vmem:[#allocation2 + $0x50] sm:$0xff] %vm114, %v201
  %206 = vst.msk [vmem:[#allocation2 + $0x58] sm:$0xff] %vm114, %v202
  %v207 = vld [vmem:[#allocation2 + $0x10] sm:$0xff]
  %v208 = vld [vmem:[#allocation2 + $0x18] sm:$0xff]
  %v209 = vld [vmem:[#allocation2 + $0x20] sm:$0xff]
  %v210 = vld [vmem:[#allocation2 + $0x28] sm:$0xff]
  %v211 = vld [vmem:[#allocation2 + $0x30] sm:$0xff]
  %v212 = vld [vmem:[#allocation2 + $0x38] sm:$0xff]
  %v213 = vld [vmem:[#allocation2 + $0x40] sm:$0xff]
  %v214 = vld [vmem:[#allocation2 + $0x48] sm:$0xff]
  %v215 = vld [vmem:[%s3] sm:$0xf]
  %v216 = vld [vmem:[%s3 + $0x4] sm:$0xf]
  %v217 = vld [vmem:[%s3 + $0x8] sm:$0xf]
  %v218 = vld [vmem:[%s3 + $0xc] sm:$0xf]
  %v219 = vld [vmem:[%s4] sm:$0x1]
  %v221 = vlaneseq
  %v222 = vshrl.u32 %v221, 7
  %v223 = vsub.s32 0, %v222
  %v224 = vrot.slane %v219, %v223
  %v230 = vunpack.c.l.b16 %v215
  %v231 = vunpack.c.l.b16 %v216
  %v232 = vunpack.c.l.b16 %v217
  %v233 = vunpack.c.l.b16 %v218
  %v234 = vpack.c.b16 %v231, %v230
  %v235 = vpack.c.b16 %v233, %v232
  %v239 = vsel %vm114, %v207, 0
  %v242 = vsel %vm114, %v208, 0
  %v245 = vsel %vm114, %v209, 0
  %v248 = vsel %vm114, %v210, 0
  %v251 = vsel %vm114, %v211, 0
  %v254 = vsel %vm114, %v212, 0
  %v257 = vsel %vm114, %v213, 0
  %v260 = vsel %vm114, %v214, 0
  %262 = vmatprep.subr.bf16.mxu0 0
  %263 = vmatpush1.bf16.msra.mxu0 %v234
  %264 = vmatprep.subr.bf16.mxu0 0
  %265 = vmatpush1.bf16.msra.mxu0 %v235
  %266 = vmatprep.subr.bf16.mxu0 0
  %267 = vmatpush1.bf16.msra.mxu0 0
  %268 = vmatprep.subr.bf16.mxu0 0
  %269 = vmatpush1.bf16.msra.mxu0 0
  %270 = vmatprep.subr.bf16.mxu0 0
  %271 = vmatpush1.bf16.msra.mxu0 0
  %272 = vmatprep.subr.bf16.mxu0 0
  %273 = vmatpush1.bf16.msra.mxu0 0
  %274 = vmatprep.subr.bf16.mxu0 0
  %275 = vmatpush1.bf16.msra.mxu0 0
  %276 = vmatprep.subr.bf16.mxu0 0
  %277 = vmatpush1.bf16.msra.mxu0 0
  %278 = vmatprep.subr.bf16.mxu0 0
  %279 = vmatpush1.bf16.msra.mxu0 0
  %280 = vmatprep.subr.bf16.mxu0 0
  %281 = vmatpush1.bf16.msra.mxu0 0
  %282 = vmatprep.subr.bf16.mxu0 0
  %283 = vmatpush1.bf16.msra.mxu0 0
  %284 = vmatprep.subr.bf16.mxu0 0
  %285 = vmatpush1.bf16.msra.mxu0 0
  %286 = vmatprep.subr.bf16.mxu0 0
  %287 = vmatpush1.bf16.msra.mxu0 0
  %288 = vmatprep.subr.bf16.mxu0 0
  %289 = vmatpush1.bf16.msra.mxu0 0
  %290 = vmatprep.subr.bf16.mxu0 0
  %291 = vmatpush1.bf16.msra.mxu0 0
  %292 = vmatprep.subr.bf16.mxu0 0
  %293 = vmatpush1.bf16.msra.mxu0 0
  %294 = vmatprep.mubr.bf16.mxu0 0
  %295 = vmatmul.mubr.bf16.gmra.mrb[0].mxu0 %v239
  %v296 = vpop.f32.mrb[0].mxu0
  %v297 = vadd.f32 %v224, %v296
  %v298 = vpop.f32.mrb[0].mxu0
  %v299 = vpop.f32.mrb[0].mxu0
  %v300 = vadd.f32 %v224, %v299
  %v301 = vpop.f32.mrb[0].mxu0
  %302 = vmatprep.mubr.bf16.mxu0 0
  %303 = vmatmul.mubr.bf16.gmra.mrb[0].mxu0 %v242
  %v304 = vpop.f32.mrb[0].mxu0
  %v305 = vadd.f32 %v224, %v304
  %v306 = vpop.f32.mrb[0].mxu0
  %v307 = vpop.f32.mrb[0].mxu0
  %v308 = vadd.f32 %v224, %v307
  %v309 = vpop.f32.mrb[0].mxu0
  %310 = vmatprep.mubr.bf16.mxu0 0
  %311 = vmatmul.mubr.bf16.gmra.mrb[0].mxu0 %v245
  %v312 = vpop.f32.mrb[0].mxu0
  %v313 = vadd.f32 %v224, %v312
  %v314 = vpop.f32.mrb[0].mxu0
  %v315 = vpop.f32.mrb[0].mxu0
  %v316 = vadd.f32 %v224, %v315
  %v317 = vpop.f32.mrb[0].mxu0
  %318 = vmatprep.mubr.bf16.mxu0 0
  %319 = vmatmul.mubr.bf16.gmra.mrb[0].mxu0 %v248
  %v320 = vpop.f32.mrb[0].mxu0
  %v321 = vadd.f32 %v224, %v320
  %v322 = vpop.f32.mrb[0].mxu0
  %v323 = vpop.f32.mrb[0].mxu0
  %v324 = vadd.f32 %v224, %v323
  %v325 = vpop.f32.mrb[0].mxu0
  %326 = vmatprep.mubr.bf16.mxu0 0
  %327 = vmatmul.mubr.bf16.gmra.mrb[0].mxu0 %v251
  %v328 = vpop.f32.mrb[0].mxu0
  %v329 = vadd.f32 %v224, %v328
  %v330 = vpop.f32.mrb[0].mxu0
  %v331 = vpop.f32.mrb[0].mxu0
  %v332 = vadd.f32 %v224, %v331
  %v333 = vpop.f32.mrb[0].mxu0
  %334 = vmatprep.mubr.bf16.mxu0 0
  %335 = vmatmul.mubr.bf16.gmra.mrb[0].mxu0 %v254
  %v336 = vpop.f32.mrb[0].mxu0
  %v337 = vadd.f32 %v224, %v336
  %v338 = vpop.f32.mrb[0].mxu0
  %v339 = vpop.f32.mrb[0].mxu0
  %v340 = vadd.f32 %v224, %v339
  %v341 = vpop.f32.mrb[0].mxu0
  %342 = vmatprep.mubr.bf16.mxu0 0
  %343 = vmatmul.mubr.bf16.gmra.mrb[0].mxu0 %v257
  %v344 = vpop.f32.mrb[0].mxu0
  %v345 = vadd.f32 %v224, %v344
  %v346 = vpop.f32.mrb[0].mxu0
  %v347 = vpop.f32.mrb[0].mxu0
  %v348 = vadd.f32 %v224, %v347
  %v349 = vpop.f32.mrb[0].mxu0
  %350 = vmatprep.mubr.bf16.mxu0 0
  %351 = vmatmul.mubr.bf16.gmra.mrb[0].mxu0 %v260
  %v352 = vpop.f32.mrb[0].mxu0
  %v353 = vadd.f32 %v224, %v352
  %v354 = vpop.f32.mrb[0].mxu0
  %v355 = vpop.f32.mrb[0].mxu0
  %v356 = vadd.f32 %v224, %v355
  %v357 = vpop.f32.mrb[0].mxu0
  %358 = vdwg.mxu0
  %v359 = vmax.f32 %v297, 0.0
  %v360 = vmax.f32 %v300, 0.0
  %v361 = vmax.f32 %v305, 0.0
  %v362 = vmax.f32 %v308, 0.0
  %v363 = vmax.f32 %v313, 0.0
  %v364 = vmax.f32 %v316, 0.0
  %v365 = vmax.f32 %v321, 0.0
  %v366 = vmax.f32 %v324, 0.0
  %v367 = vmax.f32 %v329, 0.0
  %v368 = vmax.f32 %v332, 0.0
  %v369 = vmax.f32 %v337, 0.0
  %v370 = vmax.f32 %v340, 0.0
  %v371 = vmax.f32 %v345, 0.0
  %v372 = vmax.f32 %v348, 0.0
  %v373 = vmax.f32 %v353, 0.0
  %v374 = vmax.f32 %v356, 0.0
  %v375 = vld [vmem:[%s5] sm:$0xff]
  %v376 = vld [vmem:[%s5 + $0x8] sm:$0xff]
  %v377 = vld [vmem:[%s5 + $0x10] sm:$0xff]
  %v378 = vld [vmem:[%s5 + $0x18] sm:$0xff]
  %v379 = vld [vmem:[%s5 + $0x20] sm:$0xff]
  %v380 = vld [vmem:[%s5 + $0x28] sm:$0xff]
  %v381 = vld [vmem:[%s5 + $0x30] sm:$0xff]
  %v382 = vld [vmem:[%s5 + $0x38] sm:$0xff]
  %v383 = vld [vmem:[%s5 + $0x40] sm:$0xff]
  %v384 = vld [vmem:[%s5 + $0x48] sm:$0xff]
  %v385 = vld [vmem:[%s5 + $0x50] sm:$0xff]
  %v386 = vld [vmem:[%s5 + $0x58] sm:$0xff]
  %v387 = vld [vmem:[%s5 + $0x60] sm:$0xff]
  %v388 = vld [vmem:[%s5 + $0x68] sm:$0xff]
  %v389 = vld [vmem:[%s5 + $0x70] sm:$0xff]
  %v390 = vld [vmem:[%s5 + $0x78] sm:$0xff]
  %vm391 = vcmp.ne.f32.partialorder %v375, 0.0
  %vm392 = vcmp.ne.f32.partialorder %v376, 0.0
  %vm393 = vcmp.ne.f32.partialorder %v377, 0.0
  %vm394 = vcmp.ne.f32.partialorder %v378, 0.0
  %vm395 = vcmp.ne.f32.partialorder %v379, 0.0
  %vm396 = vcmp.ne.f32.partialorder %v380, 0.0
  %vm397 = vcmp.ne.f32.partialorder %v381, 0.0
  %vm398 = vcmp.ne.f32.partialorder %v382, 0.0
  %vm399 = vcmp.ne.f32.partialorder %v383, 0.0
  %vm400 = vcmp.ne.f32.partialorder %v384, 0.0
  %vm401 = vcmp.ne.f32.partialorder %v385, 0.0
  %vm402 = vcmp.ne.f32.partialorder %v386, 0.0
  %vm403 = vcmp.ne.f32.partialorder %v387, 0.0
  %vm404 = vcmp.ne.f32.partialorder %v388, 0.0
  %vm405 = vcmp.ne.f32.partialorder %v389, 0.0
  %vm406 = vcmp.ne.f32.partialorder %v390, 0.0
  %v407 = vsel %vm391, 1, 0
  %v408 = vsel %vm392, 1, 0
  %v409 = vsel %vm393, 1, 0
  %v410 = vsel %vm394, 1, 0
  %v411 = vsel %vm395, 1, 0
  %v412 = vsel %vm396, 1, 0
  %v413 = vsel %vm397, 1, 0
  %v414 = vsel %vm398, 1, 0
  %v415 = vsel %vm399, 1, 0
  %v416 = vsel %vm400, 1, 0
  %v417 = vsel %vm401, 1, 0
  %v418 = vsel %vm402, 1, 0
  %v419 = vsel %vm403, 1, 0
  %v420 = vsel %vm404, 1, 0
  %v421 = vsel %vm405, 1, 0
  %v422 = vsel %vm406, 1, 0
  %423 = vset.pattern.permute.xlu0 0
  %424 = vperm.xlu0 %423, %v407
  %v425 = vpop.permute.xlu0 %424
  %426 = vset.pattern.permute.xlu0 0
  %427 = vperm.xlu0 %426, %v408
  %v428 = vpop.permute.xlu0 %427
  %429 = vset.pattern.permute.xlu0 0
  %430 = vperm.xlu0 %429, %v409
  %v431 = vpop.permute.xlu0 %430
  %432 = vset.pattern.permute.xlu0 0
  %433 = vperm.xlu0 %432, %v410
  %v434 = vpop.permute.xlu0 %433
  %435 = vset.pattern.permute.xlu0 0
  %436 = vperm.xlu0 %435, %v411
  %v437 = vpop.permute.xlu0 %436
  %438 = vset.pattern.permute.xlu0 0
  %439 = vperm.xlu0 %438, %v412
  %v440 = vpop.permute.xlu0 %439
  %441 = vset.pattern.permute.xlu0 0
  %442 = vperm.xlu0 %441, %v413
  %v443 = vpop.permute.xlu0 %442
  %444 = vset.pattern.permute.xlu0 0
  %445 = vperm.xlu0 %444, %v414
  %v446 = vpop.permute.xlu0 %445
  %447 = vset.pattern.permute.xlu0 0
  %448 = vperm.xlu0 %447, %v415
  %v449 = vpop.permute.xlu0 %448
  %450 = vset.pattern.permute.xlu0 0
  %451 = vperm.xlu0 %450, %v416
  %v452 = vpop.permute.xlu0 %451
  %453 = vset.pattern.permute.xlu0 0
  %454 = vperm.xlu0 %453, %v417
  %v455 = vpop.permute.xlu0 %454
  %456 = vset.pattern.permute.xlu0 0
  %457 = vperm.xlu0 %456, %v418
  %v458 = vpop.permute.xlu0 %457
  %459 = vset.pattern.permute.xlu0 0
  %460 = vperm.xlu0 %459, %v419
  %v461 = vpop.permute.xlu0 %460
  %462 = vset.pattern.permute.xlu0 0
  %463 = vperm.xlu0 %462, %v420
  %v464 = vpop.permute.xlu0 %463
  %465 = vset.pattern.permute.xlu0 0
  %466 = vperm.xlu0 %465, %v421
  %v467 = vpop.permute.xlu0 %466
  %468 = vset.pattern.permute.xlu0 0
  %469 = vperm.xlu0 %468, %v422
  %v470 = vpop.permute.xlu0 %469
  %vm471 = vcmp.eq.s32.totalorder %v425, 1
  %vm472 = vcmp.eq.s32.totalorder %v428, 1
  %vm473 = vcmp.eq.s32.totalorder %v431, 1
  %vm474 = vcmp.eq.s32.totalorder %v434, 1
  %vm475 = vcmp.eq.s32.totalorder %v437, 1
  %vm476 = vcmp.eq.s32.totalorder %v440, 1
  %vm477 = vcmp.eq.s32.totalorder %v443, 1
  %vm478 = vcmp.eq.s32.totalorder %v446, 1
  %vm479 = vcmp.eq.s32.totalorder %v449, 1
  %vm480 = vcmp.eq.s32.totalorder %v452, 1
  %vm481 = vcmp.eq.s32.totalorder %v455, 1
  %vm482 = vcmp.eq.s32.totalorder %v458, 1
  %vm483 = vcmp.eq.s32.totalorder %v461, 1
  %vm484 = vcmp.eq.s32.totalorder %v464, 1
  %vm485 = vcmp.eq.s32.totalorder %v467, 1
  %vm486 = vcmp.eq.s32.totalorder %v470, 1
  %v487 = vsel %vm471, %v359, 0.0
  %v488 = vsel %vm472, %v360, 0.0
  %v489 = vsel %vm473, %v361, 0.0
  %v490 = vsel %vm474, %v362, 0.0
  %v491 = vsel %vm475, %v363, 0.0
  %v492 = vsel %vm476, %v364, 0.0
  %v493 = vsel %vm477, %v365, 0.0
  %v494 = vsel %vm478, %v366, 0.0
  %v495 = vsel %vm479, %v367, 0.0
  %v496 = vsel %vm480, %v368, 0.0
  %v497 = vsel %vm481, %v369, 0.0
  %v498 = vsel %vm482, %v370, 0.0
  %v499 = vsel %vm483, %v371, 0.0
  %v500 = vsel %vm484, %v372, 0.0
  %v501 = vsel %vm485, %v373, 0.0
  %v502 = vsel %vm486, %v374, 0.0
  %v503 = vpack.c.bf16 %v488, %v487
  %v504 = vpack.c.bf16 %v490, %v489
  %v505 = vpack.c.bf16 %v492, %v491
  %v506 = vpack.c.bf16 %v494, %v493
  %v507 = vpack.c.bf16 %v496, %v495
  %v508 = vpack.c.bf16 %v498, %v497
  %v509 = vpack.c.bf16 %v500, %v499
  %v510 = vpack.c.bf16 %v502, %v501
  %v519 = vunpack.c.l.b16 %v503
  %v520 = vunpack.c.h.b16 %v503
  %v521 = vunpack.c.l.b16 %v504
  %v522 = vunpack.c.h.b16 %v504
  %v523 = vunpack.c.l.b16 %v505
  %v524 = vunpack.c.h.b16 %v505
  %v525 = vunpack.c.l.b16 %v506
  %v526 = vunpack.c.h.b16 %v506
  %v527 = vunpack.c.l.b16 %v507
  %v528 = vunpack.c.h.b16 %v507
  %v529 = vunpack.c.l.b16 %v508
  %v530 = vunpack.c.h.b16 %v508
  %v531 = vunpack.c.l.b16 %v509
  %v532 = vunpack.c.h.b16 %v509
  %v533 = vunpack.c.l.b16 %v510
  %v534 = vunpack.c.h.b16 %v510
  %v535 = vpack.c.b16 %v519, %v519
  %v536 = vpack.c.b16 %v520, %v520
  %v537 = vpack.c.b16 %v521, %v521
  %v538 = vpack.c.b16 %v522, %v522
  %v539 = vpack.c.b16 %v523, %v523
  %v540 = vpack.c.b16 %v524, %v524
  %v541 = vpack.c.b16 %v525, %v525
  %v542 = vpack.c.b16 %v526, %v526
  %v543 = vpack.c.b16 %v527, %v527
  %v544 = vpack.c.b16 %v528, %v528
  %v545 = vpack.c.b16 %v529, %v529
  %v546 = vpack.c.b16 %v530, %v530
  %v547 = vpack.c.b16 %v531, %v531
  %v548 = vpack.c.b16 %v532, %v532
  %v549 = vpack.c.b16 %v533, %v533
  %v550 = vpack.c.b16 %v534, %v534
  %vm567 = vcmask 125952
  %568 = vst.msk [vmem:[%s6] sm:$0xf] %vm567, %v535
  %569 = vst.msk [vmem:[%s6 + $0x4] sm:$0xf] %vm567, %v536
  %570 = vst.msk [vmem:[%s6 + $0x8] sm:$0xf] %vm567, %v537
  %571 = vst.msk [vmem:[%s6 + $0xc] sm:$0xf] %vm567, %v538
  %572 = vst.msk [vmem:[%s6 + $0x10] sm:$0xf] %vm567, %v539
  %573 = vst.msk [vmem:[%s6 + $0x14] sm:$0xf] %vm567, %v540
  %574 = vst.msk [vmem:[%s6 + $0x18] sm:$0xf] %vm567, %v541
  %575 = vst.msk [vmem:[%s6 + $0x1c] sm:$0xf] %vm567, %v542
  %576 = vst.msk [vmem:[%s6 + $0x20] sm:$0xf] %vm567, %v543
  %577 = vst.msk [vmem:[%s6 + $0x24] sm:$0xf] %vm567, %v544
  %578 = vst.msk [vmem:[%s6 + $0x28] sm:$0xf] %vm567, %v545
  %579 = vst.msk [vmem:[%s6 + $0x2c] sm:$0xf] %vm567, %v546
  %580 = vst.msk [vmem:[%s6 + $0x30] sm:$0xf] %vm567, %v547
  %581 = vst.msk [vmem:[%s6 + $0x34] sm:$0xf] %vm567, %v548
  %582 = vst.msk [vmem:[%s6 + $0x38] sm:$0xf] %vm567, %v549
  %583 = vst.msk [vmem:[%s6 + $0x3c] sm:$0xf] %vm567, %v550
  // Predicated region
  $region26: #{tpu_custom_call.1} parent=0 // pred_check
    _
  $region27: #{tpu_custom_call.1} parent=0 // pred_check_branch
    %585 = sbr.rel (0) target = $region29
  $region28: #{tpu_custom_call.1} parent=0 // pred_region
    _
  $region29: #{tpu_custom_call.1} parent=0 // pred_fallthru
    _
  // Predicated region
  $region30: #{tpu_custom_call.1} parent=0 // pred_check
    _
  $region31: #{tpu_custom_call.1} parent=0 // pred_check_branch
    %587 = sbr.rel (0) target = $region33
  $region32: #{tpu_custom_call.1} parent=0 // pred_region
    _
  $region33: #{tpu_custom_call.1} parent=0 // pred_fallthru
    _

</llo_original>
